<compile_context>
chip_gen: v6e
topology: v6e:2x2x1
jax: 0.10.0
libtpu: 0.0.40
codegen_flags: <defaults>
</compile_context>

<pallas_src>
import jax
import jax.numpy as jnp
import numpy as np
from jax.experimental import pallas as pl
from jax.experimental.pallas import tpu as pltpu


def rnn_lookup_kernel(tok_ref, table_ref, bias_ref, out_ref):
    """Whole RNN forward collapsed to one lookup matmul.

    tok_ref   : (BT, T, 1) int32   token ids, pre-offset by t*V
    table_ref : (T*V, O)  float32  per-timestep folded weight table
    bias_ref  : (1, O)    float32  fully folded bias
    out_ref   : (BT, O)   float32  logits for this batch tile
    """
    bt, t_len, _ = tok_ref.shape
    tv = table_ref.shape[0]

    # Multi-hot over the flattened (time * vocab) axis: one compare, one
    # sublane-axis reduce.  (BT, T, TV) is only a handful of vregs here.
    iota = jax.lax.broadcasted_iota(jnp.int32, (bt, t_len, tv), 2)
    onehot = (iota == tok_ref[...]).astype(jnp.float32)        # (BT, T, TV)
    multihot = jnp.sum(onehot, axis=1)                         # (BT, TV)

    # The entire recurrence + output head is this single MXU dot.
    out_ref[...] = (jnp.dot(multihot, table_ref[...],
                            preferred_element_type=jnp.float32)
                    + bias_ref[...])


def prepare_lookup_table(params, hidden_size, seq_len):
    """One-time folding of all weights into a (T*V, O) lookup table + bias.

    Linearity gives  h_{T-1} = sum_{t<T-1} pre_t @ Whh^(T-2-t)  with
    pre_t = onehot_t @ (We^T @ Whe) + (be @ Whe + bh), so the full forward is
    out = multihot @ Table + b_total.  Call once per (params, seq_len); do not
    re-run per forward call.
    """
    we_t, be, wh_t, bh, wo_t, bo = params
    V, E = we_t.shape
    H = hidden_size
    O = wo_t.shape[1]
    T = seq_len

    # Split the concat seam:  [e, h] @ W^T  ==  e @ W_e + h @ W_h
    whe, whh = wh_t[:E, :], wh_t[E:, :]
    woe, woh = wo_t[:E, :], wo_t[E:, :]

    wcomb_h = we_t @ whe                      # (V, H)   folded i2e -> i2h
    bcomb_h = be @ whe + bh                   # (H,)
    wcomb_o = we_t @ woe                      # (V, O)   folded i2e -> i2o
    bcomb_o = be @ woe + bo                   # (O,)

    tables = [None] * T
    bias_total = bcomb_o
    m = woh                                   # m = Whh^(T-2-t) @ Woh, built back-to-front
    for t in range(T - 2, -1, -1):
        tables[t] = wcomb_h @ m               # (V, O)
        bias_total = bias_total + bcomb_h @ m
        m = whh @ m
    tables[T - 1] = wcomb_o

    table = jnp.concatenate(tables, axis=0).astype(jnp.float32)   # (T*V, O)
    return table, bias_total.reshape(1, O).astype(jnp.float32)


def _pick_batch_tile(batch):
    for bt in (256, 128, 64, 32, 16, 8):
        if batch % bt == 0:
            return bt
    return batch


def rnn_forward(tokens, table, bias, vocab_size):
    """tokens: (B, T) int32. table/bias from prepare_lookup_table. -> (B, O)."""
    B, T = tokens.shape
    V = vocab_size
    TV, O = table.shape
    assert TV == T * V, "table was prepared for a different sequence length"

    # Offset token ids by t*V so one multi-hot row indexes the whole table.
    otok = (tokens.astype(jnp.int32)
            + (jnp.arange(T, dtype=jnp.int32) * V)[None, :]).reshape(B, T, 1)

    bt = _pick_batch_tile(B)
    grid = (B // bt,)

    return pl.pallas_call(
        rnn_lookup_kernel,
        out_shape=jax.ShapeDtypeStruct((B, O), jnp.float32),
        grid_spec=pltpu.PrefetchScalarGridSpec(
            num_scalar_prefetch=0,
            grid=grid,
            in_specs=[
                pl.BlockSpec((bt, T, 1), lambda i: (i, 0, 0)),
                pl.BlockSpec((TV, O), lambda i: (0, 0)),
                pl.BlockSpec((1, O), lambda i: (0, 0)),
            ],
            out_specs=pl.BlockSpec((bt, O), lambda i: (i, 0)),
        ),
        compiler_params=pltpu.CompilerParams(
            dimension_semantics=("parallel",)),
    )(otok, table, bias)


def xavier_uniform(key, out_dim, in_dim):
    bound = float(np.sqrt(6.0 / (in_dim + out_dim)))
    return jax.random.uniform(key, (out_dim, in_dim), jnp.float32, -bound, bound)


def make_params(key, input_size, embed_size, hidden_size, output_size):
    k = jax.random.split(key, 6)
    # PyTorch Linear stores weight as (out, in); we pass transposed (in, out).
    w_i2e = xavier_uniform(k[0], embed_size, input_size)
    w_i2h = xavier_uniform(k[1], hidden_size, embed_size + hidden_size)
    w_i2o = xavier_uniform(k[2], output_size, embed_size + hidden_size)
    b_i2e = jax.random.uniform(k[3], (embed_size,), jnp.float32, -0.1, 0.1)
    b_i2h = jax.random.uniform(k[4], (hidden_size,), jnp.float32, -0.1, 0.1)
    b_i2o = jax.random.uniform(k[5], (output_size,), jnp.float32, -0.1, 0.1)
    return (w_i2e.T, b_i2e, w_i2h.T, b_i2h, w_i2o.T, b_i2o)


def rnn_reference(tokens, params, hidden_size):
    """Pure-JAX reference mirroring the PyTorch forward (no folding)."""
    we_t, be, wh_t, bh, wo_t, bo = params
    B, T = tokens.shape
    V = we_t.shape[0]
    h = jnp.zeros((B, hidden_size), jnp.float32)
    for t in range(T - 1):
        e = jax.nn.one_hot(tokens[:, t], V, dtype=jnp.float32) @ we_t + be
        h = jnp.concatenate([e, h], axis=1) @ wh_t + bh
    e = jax.nn.one_hot(tokens[:, T - 1], V, dtype=jnp.float32) @ we_t + be
    return jnp.concatenate([e, h], axis=1) @ wo_t + bo


if __name__ == "__main__":
    input_size = 16    # vocab
    embed_size = 16
    hidden_size = 32
    output_size = 4
    batch_size = 8
    seq_len = 8        # T*V = 128 -> one full lane tile for the lookup matmul

    key = jax.random.PRNGKey(0)
    kp, kt = jax.random.split(key)
    params = make_params(kp, input_size, embed_size, hidden_size, output_size)
    tokens = jax.random.randint(kt, (batch_size, seq_len), 0, input_size,
                                dtype=jnp.int32)

    # One-time parameter preparation (hoisted out of the forward call).
    table, bias = prepare_lookup_table(params, hidden_size, seq_len)
    table = jax.block_until_ready(table)

    out = rnn_forward(tokens, table, bias, input_size)
    out = jax.block_until_ready(out)

    ref = rnn_reference(tokens, params, hidden_size)
    # Slightly looser than before: the Whh-power collapse re-associates f32 sums.
    np.testing.assert_allclose(np.asarray(out), np.asarray(ref),
                               rtol=2e-4, atol=2e-5)
    print("KERNEL_OK")
</pallas_src>

<mosaic_0001>
module attributes {stable_mosaic.version = 11 : i64} {
  func.func @rnn_lookup_kernel(%arg0: i32, %arg1: memref<8x8x1xi32, #tpu.memory_space<vmem>>, %arg2: memref<128x4xf32, #tpu.memory_space<vmem>>, %arg3: memref<1x4xf32, #tpu.memory_space<vmem>>, %arg4: memref<8x4xf32, #tpu.memory_space<vmem>>) attributes {dimension_semantics = [#tpu.dimension_semantics<parallel>], iteration_bounds = array<i64: 1>, scalar_prefetch = 0 : i64, scratch_operands = 0 : i64, tpu.core_type = #tpu.core_type<tc>, window_params = [{transform_indices = @transform_0, window_bounds = array<i64: 8, 8, 1>}, {pipeline_mode = #tpu.pipeline_mode<synchronous>, transform_indices = @transform_1, window_bounds = array<i64: 128, 4>}, {pipeline_mode = #tpu.pipeline_mode<synchronous>, transform_indices = @transform_2, window_bounds = array<i64: 1, 4>}, {transform_indices = @transform_3, window_bounds = array<i64: 8, 4>}]} {
    %0 = tpu.iota {dimensions = array<i32: 2>} : vector<8x8x128xi32>
    %c0 = arith.constant 0 : index
    %c0_0 = arith.constant 0 : index
    %c0_1 = arith.constant 0 : index
    %1 = vector.load %arg1[%c0, %c0_0, %c0_1] : memref<8x8x1xi32, #tpu.memory_space<vmem>>, vector<8x8x1xi32>
    %2 = vector.broadcast %1 : vector<8x8x1xi32> to vector<8x8x128xi32>
    %3 = arith.cmpi eq, %0, %2 : vector<8x8x128xi32>
    %4 = arith.extui %3 : vector<8x8x128xi1> to vector<8x8x128xi32>
    %5 = arith.sitofp %4 : vector<8x8x128xi32> to vector<8x8x128xf32>
    %cst = arith.constant dense<0.000000e+00> : vector<8x128xf32>
    %6 = vector.multi_reduction <add>, %5, %cst [1] : vector<8x8x128xf32> to vector<8x128xf32>
    %c0_2 = arith.constant 0 : index
    %c0_3 = arith.constant 0 : index
    %7 = vector.load %arg2[%c0_2, %c0_3] : memref<128x4xf32, #tpu.memory_space<vmem>>, vector<128x4xf32>
    %cst_4 = arith.constant dense<0.000000e+00> : vector<8x4xf32>
    %8 = tpu.matmul %6, %7, %cst_4 {dimension_numbers = #tpu.dot_dimension_numbers<[1], [0], [0], [1], [0, 0, 1, 1], [], []>} : vector<8x128xf32>, vector<128x4xf32>, vector<8x4xf32> -> vector<8x4xf32>
    %c0_5 = arith.constant 0 : index
    %c0_6 = arith.constant 0 : index
    %9 = vector.load %arg3[%c0_5, %c0_6] : memref<1x4xf32, #tpu.memory_space<vmem>>, vector<1x4xf32>
    %10 = vector.broadcast %9 : vector<1x4xf32> to vector<8x4xf32>
    %11 = arith.addf %8, %10 : vector<8x4xf32>
    %c0_7 = arith.constant 0 : index
    %c0_8 = arith.constant 0 : index
    %12 = vector.load %arg4[%c0_7, %c0_8] : memref<8x4xf32, #tpu.memory_space<vmem>>, vector<8x4xf32>
    tpu.vector_store %arg4[%c0_7, %c0_8], %11 {strides = array<i32>} : memref<8x4xf32, #tpu.memory_space<vmem>>, vector<8x4xf32>,
    return
  }
  func.func @transform_0(%arg0: i32) -> (i32, i32, i32) {
    %c0_i32 = arith.constant 0 : i32
    %c0_i32_0 = arith.constant 0 : i32
    %c0_i32_1 = arith.constant 0 : i32
    return %arg0, %c0_i32, %c0_i32_0 : i32, i32, i32
  }
  func.func @transform_1(%arg0: i32) -> (i32, i32) {
    %c0_i32 = arith.constant 0 : i32
    %c0_i32_0 = arith.constant 0 : i32
    %c0_i32_1 = arith.constant 0 : i32
    return %c0_i32, %c0_i32_0 : i32, i32
  }
  func.func @transform_2(%arg0: i32) -> (i32, i32) {
    %c0_i32 = arith.constant 0 : i32
    %c0_i32_0 = arith.constant 0 : i32
    %c0_i32_1 = arith.constant 0 : i32
    return %c0_i32, %c0_i32_0 : i32, i32
  }
  func.func @transform_3(%arg0: i32) -> (i32, i32) {
    %c0_i32 = arith.constant 0 : i32
    %c0_i32_0 = arith.constant 0 : i32
    return %arg0, %c0_i32 : i32, i32
  }
}

</mosaic_0001>

<llo_original>
// kernel: tpu_custom_call.1
$region0: #{tpu_custom_call.1}
  #allocation0 [shape = 'u32[]', space=smem, size = 0x4, offset = 0x4, fixed_abs, tag = 'smem constant byte address 0x4 - core index']
  #allocation1 [shape = 'u32[144,128]{1,0:T(1,128)}', space=vmem, size = 0x12000, scoped, tag = 'internal scratch']
  %s0 = inlined_call_operand.vmem [shape: s32[8,8,1], index: 0, kind: input, shape index: {}]
  %s1 = inlined_call_operand.vmem [shape: f32[128,4], index: 1, kind: input, shape index: {}]
  %s2 = inlined_call_operand.vmem [shape: f32[1,4], index: 2, kind: input, shape index: {}]
  %s3 = inlined_call_operand.vmem [shape: f32[8,4], index: 3, kind: output, shape index: {}]
  %s4 = sld [smem:[#allocation0]]
  $region22: #{tpu_custom_call.1} parent=0
    _
  %s6 = ssub.s32 1, %s4
  %s7 = scalar_select 0, %s6, %s4
  // Predicated region
  $region2: #{tpu_custom_call.1} parent=0 // pred_check
    _
  $region3: #{tpu_custom_call.1} parent=0 // pred_check_branch
    %9 = sbr.rel (0) target = $region5
  $region4: #{tpu_custom_call.1} parent=0 // pred_region
    _
  $region5: #{tpu_custom_call.1} parent=0 // pred_fallthru
    _
  // Predicated region
  $region6: #{tpu_custom_call.1} parent=0 // pred_check
    _
  $region7: #{tpu_custom_call.1} parent=0 // pred_check_branch
    %11 = sbr.rel (0) target = $region9
  $region8: #{tpu_custom_call.1} parent=0 // pred_region
    _
  $region9: #{tpu_custom_call.1} parent=0 // pred_fallthru
    _
  // Predicated region
  $region10: #{tpu_custom_call.1} parent=0 // pred_check
    _
  $region11: #{tpu_custom_call.1} parent=0 // pred_check_branch
    %13 = sbr.rel (0) target = $region13
  $region12: #{tpu_custom_call.1} parent=0 // pred_region
    _
  $region13: #{tpu_custom_call.1} parent=0 // pred_fallthru
    _
  %v14 = vlaneseq
  %v15 = vand.u32 %v14, 127
  %v16 = vld [vmem:[%s0] sm:$0xff]
  %v17 = vld [vmem:[%s0 + $0x8] sm:$0xff]
  %v18 = vld [vmem:[%s0 + $0x10] sm:$0xff]
  %v19 = vld [vmem:[%s0 + $0x18] sm:$0xff]
  %v20 = vld [vmem:[%s0 + $0x20] sm:$0xff]
  %v21 = vld [vmem:[%s0 + $0x28] sm:$0xff]
  %v22 = vld [vmem:[%s0 + $0x30] sm:$0xff]
  %v23 = vld [vmem:[%s0 + $0x38] sm:$0xff]
  %24 = vset.pattern.permute.xlu0 0
  %25 = vperm.xlu0 %24, %v16
  %v26 = vpop.permute.xlu0 %25
  %27 = vset.pattern.permute.xlu0 0
  %28 = vperm.xlu0 %27, %v17
  %v29 = vpop.permute.xlu0 %28
  %30 = vset.pattern.permute.xlu0 0
  %31 = vperm.xlu0 %30, %v18
  %v32 = vpop.permute.xlu0 %31
  %33 = vset.pattern.permute.xlu0 0
  %34 = vperm.xlu0 %33, %v19
  %v35 = vpop.permute.xlu0 %34
  %36 = vset.pattern.permute.xlu0 0
  %37 = vperm.xlu0 %36, %v20
  %v38 = vpop.permute.xlu0 %37
  %39 = vset.pattern.permute.xlu0 0
  %40 = vperm.xlu0 %39, %v21
  %v41 = vpop.permute.xlu0 %40
  %42 = vset.pattern.permute.xlu0 0
  %43 = vperm.xlu0 %42, %v22
  %v44 = vpop.permute.xlu0 %43
  %45 = vset.pattern.permute.xlu0 0
  %46 = vperm.xlu0 %45, %v23
  %v47 = vpop.permute.xlu0 %46
  %vm48 = vcmp.eq.s32.totalorder %v15, %v26
  %vm49 = vcmp.eq.s32.totalorder %v15, %v29
  %vm50 = vcmp.eq.s32.totalorder %v15, %v32
  %vm51 = vcmp.eq.s32.totalorder %v15, %v35
  %vm52 = vcmp.eq.s32.totalorder %v15, %v38
  %vm53 = vcmp.eq.s32.totalorder %v15, %v41
  %vm54 = vcmp.eq.s32.totalorder %v15, %v44
  %vm55 = vcmp.eq.s32.totalorder %v15, %v47
  %v56 = vsel %vm48, 1, 0
  %v57 = vsel %vm49, 1, 0
  %v58 = vsel %vm50, 1, 0
  %v59 = vsel %vm51, 1, 0
  %v60 = vsel %vm52, 1, 0
  %v61 = vsel %vm53, 1, 0
  %v62 = vsel %vm54, 1, 0
  %v63 = vsel %vm55, 1, 0
  %v64 = vcvt.s32.f32 %v56
  %v65 = vcvt.s32.f32 %v57
  %v66 = vcvt.s32.f32 %v58
  %v67 = vcvt.s32.f32 %v59
  %v68 = vcvt.s32.f32 %v60
  %v69 = vcvt.s32.f32 %v61
  %v70 = vcvt.s32.f32 %v62
  %v71 = vcvt.s32.f32 %v63
  %v72 = vrot.slane %v64, 4
  %v73 = vadd.f32 %v64, %v72
  %v74 = vrot.slane %v73, 2
  %v75 = vadd.f32 %v73, %v74
  %v76 = vrot.slane %v75, 1
  %v77 = vadd.f32 %v75, %v76
  %v78 = vrot.slane %v65, 4
  %v79 = vadd.f32 %v65, %v78
  %v80 = vrot.slane %v79, 2
  %v81 = vadd.f32 %v79, %v80
  %v82 = vrot.slane %v81, 1
  %v83 = vadd.f32 %v81, %v82
  %v84 = vrot.slane %v66, 4
  %v85 = vadd.f32 %v66, %v84
  %v86 = vrot.slane %v85, 2
  %v87 = vadd.f32 %v85, %v86
  %v88 = vrot.slane %v87, 1
  %v89 = vadd.f32 %v87, %v88
  %v90 = vrot.slane %v67, 4
  %v91 = vadd.f32 %v67, %v90
  %v92 = vrot.slane %v91, 2
  %v93 = vadd.f32 %v91, %v92
  %v94 = vrot.slane %v93, 1
  %v95 = vadd.f32 %v93, %v94
  %v96 = vrot.slane %v68, 4
  %v97 = vadd.f32 %v68, %v96
  %v98 = vrot.slane %v97, 2
  %v99 = vadd.f32 %v97, %v98
  %v100 = vrot.slane %v99, 1
  %v101 = vadd.f32 %v99, %v100
  %v102 = vrot.slane %v69, 4
  %v103 = vadd.f32 %v69, %v102
  %v104 = vrot.slane %v103, 2
  %v105 = vadd.f32 %v103, %v104
  %v106 = vrot.slane %v105, 1
  %v107 = vadd.f32 %v105, %v106
  %v108 = vrot.slane %v70, 4
  %v109 = vadd.f32 %v70, %v108
  %v110 = vrot.slane %v109, 2
  %v111 = vadd.f32 %v109, %v110
  %v112 = vrot.slane %v111, 1
  %v113 = vadd.f32 %v111, %v112
  %v114 = vrot.slane %v71, 4
  %v115 = vadd.f32 %v71, %v114
  %v116 = vrot.slane %v115, 2
  %v117 = vadd.f32 %v115, %v116
  %v118 = vrot.slane %v117, 1
  %v119 = vadd.f32 %v117, %v118
  %v120 = vld [vmem:[%s1] sm:$0xff]
  %v121 = vld [vmem:[%s1 + $0x8] sm:$0xff]
  %v122 = vld [vmem:[%s1 + $0x10] sm:$0xff]
  %v123 = vld [vmem:[%s1 + $0x18] sm:$0xff]
  %v124 = vld [vmem:[%s1 + $0x20] sm:$0xff]
  %v125 = vld [vmem:[%s1 + $0x28] sm:$0xff]
  %v126 = vld [vmem:[%s1 + $0x30] sm:$0xff]
  %v127 = vld [vmem:[%s1 + $0x38] sm:$0xff]
  %v128 = vld [vmem:[%s1 + $0x40] sm:$0xff]
  %v129 = vld [vmem:[%s1 + $0x48] sm:$0xff]
  %v130 = vld [vmem:[%s1 + $0x50] sm:$0xff]
  %v131 = vld [vmem:[%s1 + $0x58] sm:$0xff]
  %v132 = vld [vmem:[%s1 + $0x60] sm:$0xff]
  %v133 = vld [vmem:[%s1 + $0x68] sm:$0xff]
  %v134 = vld [vmem:[%s1 + $0x70] sm:$0xff]
  %v135 = vld [vmem:[%s1 + $0x78] sm:$0xff]
  %v136 = vld [vmem:[%s2] sm:$0x1]
  %v138 = vlaneseq
  %v139 = vshrl.u32 %v138, 7
  %v140 = vsub.s32 0, %v139
  %v141 = vrot.slane %v136, %v140
  %vm151 = vcmask 1041409
  %v152 = vsel %vm151, %v83, %v77
  %vm153 = vcmask 1042434
  %v154 = vsel %vm153, %v89, %v152
  %vm155 = vcmask 1043459
  %v156 = vsel %vm155, %v95, %v154
  %vm157 = vcmask 1044484
  %v158 = vsel %vm157, %v101, %v156
  %vm159 = vcmask 1045509
  %v160 = vsel %vm159, %v107, %v158
  %vm161 = vcmask 1046534
  %v162 = vsel %vm161, %v113, %v160
  %vm163 = vcmask 1047559
  %v164 = vsel %vm163, %v119, %v162
  %166 = vmatprep.subr.mxu0 0.0
  %167 = vmatpush1.msra.mxu0 %v135
  %168 = vmatprep.subr.mxu0 0.0
  %169 = vmatpush1.msra.mxu0 %v134
  %170 = vmatprep.subr.mxu0 0.0
  %171 = vmatpush1.msra.mxu0 %v133
  %172 = vmatprep.subr.mxu0 0.0
  %173 = vmatpush1.msra.mxu0 %v132
  %174 = vmatprep.subr.mxu0 0.0
  %175 = vmatpush1.msra.mxu0 %v131
  %176 = vmatprep.subr.mxu0 0.0
  %177 = vmatpush1.msra.mxu0 %v130
  %178 = vmatprep.subr.mxu0 0.0
  %179 = vmatpush1.msra.mxu0 %v129
  %180 = vmatprep.subr.mxu0 0.0
  %181 = vmatpush1.msra.mxu0 %v128
  %182 = vmatprep.subr.mxu0 0.0
  %183 = vmatpush1.msra.mxu0 %v127
  %184 = vmatprep.subr.mxu0 0.0
  %185 = vmatpush1.msra.mxu0 %v126
  %186 = vmatprep.subr.mxu0 0.0
  %187 = vmatpush1.msra.mxu0 %v125
  %188 = vmatprep.subr.mxu0 0.0
  %189 = vmatpush1.msra.mxu0 %v124
  %190 = vmatprep.subr.mxu0 0.0
  %191 = vmatpush1.msra.mxu0 %v123
  %192 = vmatprep.subr.mxu0 0.0
  %193 = vmatpush1.msra.mxu0 %v122
  %194 = vmatprep.subr.mxu0 0.0
  %195 = vmatpush1.msra.mxu0 %v121
  %196 = vmatprep.subr.mxu0 0.0
  %197 = vmatpush1.msra.mxu0 %v120
  %198 = vmatprep.subr.mxu0 0.0
  %199 = vmatpush2.msra.mxu0 0.0
  %200 = vmatprep.subr.mxu0 0.0
  %201 = vmatpush2.msra.mxu0 0.0
  %202 = vmatprep.subr.mxu0 0.0
  %203 = vmatpush2.msra.mxu0 0.0
  %204 = vmatprep.subr.mxu0 0.0
  %205 = vmatpush2.msra.mxu0 0.0
  %206 = vmatprep.subr.mxu0 0.0
  %207 = vmatpush2.msra.mxu0 0.0
  %208 = vmatprep.subr.mxu0 0.0
  %209 = vmatpush2.msra.mxu0 0.0
  %210 = vmatprep.subr.mxu0 0.0
  %211 = vmatpush2.msra.mxu0 0.0
  %212 = vmatprep.subr.mxu0 0.0
  %213 = vmatpush2.msra.mxu0 0.0
  %214 = vmatprep.subr.mxu0 0.0
  %215 = vmatpush2.msra.mxu0 0.0
  %216 = vmatprep.subr.mxu0 0.0
  %217 = vmatpush2.msra.mxu0 0.0
  %218 = vmatprep.subr.mxu0 0.0
  %219 = vmatpush2.msra.mxu0 0.0
  %220 = vmatprep.subr.mxu0 0.0
  %221 = vmatpush2.msra.mxu0 0.0
  %222 = vmatprep.subr.mxu0 0.0
  %223 = vmatpush2.msra.mxu0 0.0
  %224 = vmatprep.subr.mxu0 0.0
  %225 = vmatpush2.msra.mxu0 0.0
  %226 = vmatprep.subr.mxu0 0.0
  %227 = vmatpush2.msra.mxu0 0.0
  %228 = vmatprep.subr.mxu0 0.0
  %229 = vmatpush2.msra.mxu0 0.0
  %230 = vmatprep.mubr.f32.mxu0 0.0
  %231 = vmatmul.mubr.f32.gmra.mxu0 %v164
  %v232 = vpop.f32.mrf.mxu0
  %v233 = vadd.f32 %v141, %v232
  %v234 = vpop.f32.mrf.mxu0
  %235 = vdwg.mxu0
  %vm236 = vcmask 31744
  %237 = vst.msk [vmem:[%s3] sm:$0xff] %vm236, %v233
  // Predicated region
  $region14: #{tpu_custom_call.1} parent=0 // pred_check
    _
  $region15: #{tpu_custom_call.1} parent=0 // pred_check_branch
    %239 = sbr.rel (0) target = $region17
  $region16: #{tpu_custom_call.1} parent=0 // pred_region
    _
  $region17: #{tpu_custom_call.1} parent=0 // pred_fallthru
    _
  // Predicated region
  $region18: #{tpu_custom_call.1} parent=0 // pred_check
    _
  $region19: #{tpu_custom_call.1} parent=0 // pred_check_branch
    %241 = sbr.rel (0) target = $region21
  $region20: #{tpu_custom_call.1} parent=0 // pred_region
    _
  $region21: #{tpu_custom_call.1} parent=0 // pred_fallthru
    _

</llo_original>
